<compile_context>
chip_gen: v5e
topology: v5e:2x2
jax: 0.10.0
libtpu: 0.0.40
codegen_flags: <defaults>
</compile_context>

<pallas_src>
import functools
import math

import jax
import jax.numpy as jnp
from jax.experimental import pallas as pl
from jax.experimental.pallas import tpu as pltpu


def _round_up(x, m):
    return ((x + m - 1) // m) * m


def _mlp_kernel(x_ref, w1_ref, b1_ref, w2_ref, b2_ref, o_ref):
    x = x_ref[...]

    # fc1: x @ W1 + b1 on the MXU, f32 accumulation.
    h = jnp.dot(x, w1_ref[...], preferred_element_type=jnp.float32)
    h = h + b1_ref[...]  # b1 is (1, H), broadcasts over rows

    # Exact (erf) GELU in f32, matching torch.nn.GELU default.
    h = 0.5 * h * (1.0 + jax.lax.erf(h * (1.0 / math.sqrt(2.0))))

    # dropout(p=0.0) == identity
    # TODO(synk): stochastic dropout (pltpu.prng_seed / prng_random_bits) if drop > 0 is ever needed.

    # fc2: h @ W2 + b2 (downcast h to the weight streaming dtype for the MXU).
    out = jnp.dot(h.astype(w2_ref.dtype), w2_ref[...],
                  preferred_element_type=jnp.float32)
    out = out + b2_ref[...]

    o_ref[...] = out.astype(o_ref.dtype)


@functools.partial(jax.jit, static_argnames=("block_m",))
def mlp_forward(x, w1, b1, w2, b2, *, block_m=512):
    """x: [N, C_in] -> [N, C_out].  w1: [C_in, H], b1: [H], w2: [H, C_out], b2: [C_out].

    Weights are stored [in, out] (transpose of torch's nn.Linear.weight).
    """
    n, c_in = x.shape
    hidden = w1.shape[1]
    c_out = w2.shape[1]
    out_dtype = x.dtype

    # Lane-dense channel padding (multiples of 128). Zero padding is exact:
    # padded hidden channels give GELU(0) == 0 and contribute nothing.
    c_in_p = _round_up(c_in, 128)
    h_p = _round_up(hidden, 128)
    c_out_p = _round_up(c_out, 128)

    # Row tile: as big as requested for bandwidth, but don't over-pad tiny N.
    bm = max(8, min(block_m, _round_up(n, 128)))
    n_p = _round_up(n, bm)

    if (n_p, c_in_p) != (n, c_in):
        x = jnp.pad(x, ((0, n_p - n), (0, c_in_p - c_in)))
    if (c_in_p, h_p) != (c_in, hidden):
        w1 = jnp.pad(w1, ((0, c_in_p - c_in), (0, h_p - hidden)))
    if h_p != hidden:
        b1 = jnp.pad(b1, (0, h_p - hidden))
    if (h_p, c_out_p) != (hidden, c_out):
        w2 = jnp.pad(w2, ((0, h_p - hidden), (0, c_out_p - c_out)))
    if c_out_p != c_out:
        b2 = jnp.pad(b2, (0, c_out_p - c_out))

    b1_2d = b1.reshape(1, h_p)
    b2_2d = b2.reshape(1, c_out_p)

    grid = (n_p // bm,)

    def _nbytes(shape, dt):
        return int(math.prod(shape)) * jnp.dtype(dt).itemsize

    # VMEM budget: resident (single-buffered) weights + double-buffered x/out
    # tiles + the f32 hidden intermediate, with headroom. Capped at 64 MiB so
    # it stays valid on v7x.
    vmem_est = (
        _nbytes((c_in_p, h_p), w1.dtype) + _nbytes((h_p, c_out_p), w2.dtype)
        + _nbytes((1, h_p), b1.dtype) + _nbytes((1, c_out_p), b2.dtype)
        + 2 * _nbytes((bm, c_in_p), x.dtype)
        + 2 * _nbytes((bm, c_out_p), out_dtype)
        + _nbytes((bm, h_p), jnp.float32)
    )
    vmem_limit = int(min(max(2 * vmem_est + (4 << 20), 32 << 20), 64 << 20))

    cost = pl.CostEstimate(
        flops=2 * n_p * (c_in_p * h_p + h_p * c_out_p),
        transcendentals=n_p * h_p,
        bytes_accessed=(
            _nbytes((n_p, c_in_p), x.dtype)
            + _nbytes((c_in_p, h_p), w1.dtype)
            + _nbytes((h_p, c_out_p), w2.dtype)
            + _nbytes((1, h_p), b1.dtype)
            + _nbytes((1, c_out_p), b2.dtype)
            + _nbytes((n_p, c_out_p), out_dtype)
        ),
    )

    # Weights/biases never change across the grid -> single-buffer them.
    resident = pl.Buffered(1)

    out_padded = pl.pallas_call(
        _mlp_kernel,
        out_shape=jax.ShapeDtypeStruct((n_p, c_out_p), out_dtype),
        grid_spec=pltpu.PrefetchScalarGridSpec(
            num_scalar_prefetch=0,
            grid=grid,
            in_specs=[
                pl.BlockSpec((bm, c_in_p), lambda i: (i, 0)),                        # x tile
                pl.BlockSpec((c_in_p, h_p), lambda i: (0, 0), pipeline_mode=resident),   # W1
                pl.BlockSpec((1, h_p), lambda i: (0, 0), pipeline_mode=resident),        # b1
                pl.BlockSpec((h_p, c_out_p), lambda i: (0, 0), pipeline_mode=resident),  # W2
                pl.BlockSpec((1, c_out_p), lambda i: (0, 0), pipeline_mode=resident),    # b2
            ],
            out_specs=pl.BlockSpec((bm, c_out_p), lambda i: (i, 0)),
        ),
        compiler_params=pltpu.CompilerParams(
            dimension_semantics=("parallel",),
            vmem_limit_bytes=vmem_limit,
        ),
        cost_estimate=cost,
    )(x, w1, b1_2d, w2, b2_2d)

    # Slice away row / lane padding.
    return out_padded[:n, :c_out]


def init_mlp_params(key, in_channels, hidden_channels=None, out_channels=None,
                    dtype=jnp.float32):
    """Deterministic init mirroring nn.Linear's default (Kaiming-uniform-ish)."""
    out_channels = out_channels or in_channels
    hidden_channels = hidden_channels or in_channels
    k1, k2, k3, k4 = jax.random.split(key, 4)

    bound1 = 1.0 / math.sqrt(in_channels)
    bound2 = 1.0 / math.sqrt(hidden_channels)

    # Stored as [in, out] (transpose of torch's weight) for row-major matmul.
    w1 = jax.random.uniform(k1, (in_channels, hidden_channels), dtype,
                            minval=-bound1, maxval=bound1)
    b1 = jax.random.uniform(k2, (hidden_channels,), dtype,
                            minval=-bound1, maxval=bound1)
    w2 = jax.random.uniform(k3, (hidden_channels, out_channels), dtype,
                            minval=-bound2, maxval=bound2)
    b2 = jax.random.uniform(k4, (out_channels,), dtype,
                            minval=-bound2, maxval=bound2)
    return w1, b1, w2, b2


def mlp_reference(x, w1, b1, w2, b2):
    h = x @ w1 + b1
    h = 0.5 * h * (1.0 + jax.lax.erf(h / math.sqrt(2.0)))
    return h @ w2 + b2


if __name__ == "__main__":
    key = jax.random.PRNGKey(0)
    kx1, kx2, kp = jax.random.split(key, 3)

    # Small point-token MLP with "awkward" sizes to exercise row/lane padding:
    # N tokens, in=32, hidden=64, out=48.
    N, C_IN, HIDDEN, C_OUT = 50, 32, 64, 48
    x = jax.random.normal(kx1, (N, C_IN), dtype=jnp.float32)
    w1, b1, w2, b2 = init_mlp_params(kp, C_IN, HIDDEN, C_OUT)

    out = mlp_forward(x, w1, b1, w2, b2)  # default block_m=512 (clamped to 128 here)
    out = jax.block_until_ready(out)
    ref = mlp_reference(x, w1, b1, w2, b2)
    assert out.shape == (N, C_OUT)
    assert jnp.allclose(out, ref, atol=2e-5, rtol=2e-5), "mismatch vs reference (single tile)"

    # Second config with multiple grid steps to exercise the pipelined path.
    N2 = 300
    x2 = jax.random.normal(kx2, (N2, C_IN), dtype=jnp.float32)
    out2 = mlp_forward(x2, w1, b1, w2, b2, block_m=128)
    out2 = jax.block_until_ready(out2)
    ref2 = mlp_reference(x2, w1, b1, w2, b2)
    assert out2.shape == (N2, C_OUT)
    assert jnp.allclose(out2, ref2, atol=2e-5, rtol=2e-5), "mismatch vs reference (multi tile)"

    print("KERNEL_OK")
</pallas_src>

<mosaic_0001>
module attributes {stable_mosaic.version = 11 : i64} {
  func.func @_mlp_kernel(%arg0: i32, %arg1: memref<128x128xf32, #tpu.memory_space<vmem>>, %arg2: memref<128x128xf32, #tpu.memory_space<vmem>>, %arg3: memref<1x128xf32, #tpu.memory_space<vmem>>, %arg4: memref<128x128xf32, #tpu.memory_space<vmem>>, %arg5: memref<1x128xf32, #tpu.memory_space<vmem>>, %arg6: memref<128x128xf32, #tpu.memory_space<vmem>>) attributes {dimension_semantics = [#tpu.dimension_semantics<parallel>], iteration_bounds = array<i64: 1>, scalar_prefetch = 0 : i64, scratch_operands = 0 : i64, tpu.core_type = #tpu.core_type<tc>, window_params = [{transform_indices = @transform_0, window_bounds = array<i64: 128, 128>}, {pipeline_mode = #tpu.pipeline_mode<synchronous>, transform_indices = @transform_1, window_bounds = array<i64: 128, 128>}, {pipeline_mode = #tpu.pipeline_mode<synchronous>, transform_indices = @transform_2, window_bounds = array<i64: 1, 128>}, {pipeline_mode = #tpu.pipeline_mode<synchronous>, transform_indices = @transform_3, window_bounds = array<i64: 128, 128>}, {pipeline_mode = #tpu.pipeline_mode<synchronous>, transform_indices = @transform_4, window_bounds = array<i64: 1, 128>}, {transform_indices = @transform_5, window_bounds = array<i64: 128, 128>}]} {
    %c0 = arith.constant 0 : index
    %c0_0 = arith.constant 0 : index
    %0 = vector.load %arg1[%c0, %c0_0] : memref<128x128xf32, #tpu.memory_space<vmem>>, vector<128x128xf32>
    %c0_1 = arith.constant 0 : index
    %c0_2 = arith.constant 0 : index
    %1 = vector.load %arg2[%c0_1, %c0_2] : memref<128x128xf32, #tpu.memory_space<vmem>>, vector<128x128xf32>
    %cst = arith.constant dense<0.000000e+00> : vector<128x128xf32>
    %2 = tpu.matmul %0, %1, %cst {dimension_numbers = #tpu.dot_dimension_numbers<[1], [0], [0], [1], [0, 0, 1, 1], [], []>} : vector<128x128xf32>, vector<128x128xf32>, vector<128x128xf32> -> vector<128x128xf32>
    %c0_3 = arith.constant 0 : index
    %c0_4 = arith.constant 0 : index
    %3 = vector.load %arg3[%c0_3, %c0_4] : memref<1x128xf32, #tpu.memory_space<vmem>>, vector<1x128xf32>
    %4 = vector.broadcast %3 : vector<1x128xf32> to vector<128x128xf32>
    %5 = arith.addf %2, %4 : vector<128x128xf32>
    %cst_5 = arith.constant 5.000000e-01 : f32
    %6 = vector.broadcast %cst_5 : f32 to vector<128x128xf32>
    %7 = arith.mulf %6, %5 : vector<128x128xf32>
    %cst_6 = arith.constant 0.707106769 : f32
    %8 = vector.broadcast %cst_6 : f32 to vector<128x128xf32>
    %9 = arith.mulf %5, %8 : vector<128x128xf32>
    %10 = math.erf %9 : vector<128x128xf32>
    %cst_7 = arith.constant 1.000000e+00 : f32
    %11 = vector.broadcast %cst_7 : f32 to vector<128x128xf32>
    %12 = arith.addf %11, %10 : vector<128x128xf32>
    %13 = arith.mulf %7, %12 : vector<128x128xf32>
    %c0_8 = arith.constant 0 : index
    %c0_9 = arith.constant 0 : index
    %14 = vector.load %arg4[%c0_8, %c0_9] : memref<128x128xf32, #tpu.memory_space<vmem>>, vector<128x128xf32>
    %cst_10 = arith.constant dense<0.000000e+00> : vector<128x128xf32>
    %15 = tpu.matmul %13, %14, %cst_10 {dimension_numbers = #tpu.dot_dimension_numbers<[1], [0], [0], [1], [0, 0, 1, 1], [], []>} : vector<128x128xf32>, vector<128x128xf32>, vector<128x128xf32> -> vector<128x128xf32>
    %c0_11 = arith.constant 0 : index
    %c0_12 = arith.constant 0 : index
    %16 = vector.load %arg5[%c0_11, %c0_12] : memref<1x128xf32, #tpu.memory_space<vmem>>, vector<1x128xf32>
    %17 = vector.broadcast %16 : vector<1x128xf32> to vector<128x128xf32>
    %18 = arith.addf %15, %17 : vector<128x128xf32>
    %c0_13 = arith.constant 0 : index
    %c0_14 = arith.constant 0 : index
    %19 = vector.load %arg6[%c0_13, %c0_14] : memref<128x128xf32, #tpu.memory_space<vmem>>, vector<128x128xf32>
    tpu.vector_store %arg6[%c0_13, %c0_14], %18 {strides = array<i32>} : memref<128x128xf32, #tpu.memory_space<vmem>>, vector<128x128xf32>,
    return
  }
  func.func @transform_0(%arg0: i32) -> (i32, i32) {
    %c0_i32 = arith.constant 0 : i32
    %c0_i32_0 = arith.constant 0 : i32
    return %arg0, %c0_i32 : i32, i32
  }
  func.func @transform_1(%arg0: i32) -> (i32, i32) {
    %c0_i32 = arith.constant 0 : i32
    %c0_i32_0 = arith.constant 0 : i32
    %c0_i32_1 = arith.constant 0 : i32
    return %c0_i32, %c0_i32_0 : i32, i32
  }
  func.func @transform_2(%arg0: i32) -> (i32, i32) {
    %c0_i32 = arith.constant 0 : i32
    %c0_i32_0 = arith.constant 0 : i32
    %c0_i32_1 = arith.constant 0 : i32
    return %c0_i32, %c0_i32_0 : i32, i32
  }
  func.func @transform_3(%arg0: i32) -> (i32, i32) {
    %c0_i32 = arith.constant 0 : i32
    %c0_i32_0 = arith.constant 0 : i32
    %c0_i32_1 = arith.constant 0 : i32
    return %c0_i32, %c0_i32_0 : i32, i32
  }
  func.func @transform_4(%arg0: i32) -> (i32, i32) {
    %c0_i32 = arith.constant 0 : i32
    %c0_i32_0 = arith.constant 0 : i32
    %c0_i32_1 = arith.constant 0 : i32
    return %c0_i32, %c0_i32_0 : i32, i32
  }
  func.func @transform_5(%arg0: i32) -> (i32, i32) {
    %c0_i32 = arith.constant 0 : i32
    %c0_i32_0 = arith.constant 0 : i32
    return %arg0, %c0_i32 : i32, i32
  }
}

</mosaic_0001>

<llo_original>
// kernel: mlp_forward.1
$region0: #{mlp_forward.1}
  #allocation0 [shape = 'u32[]', space=smem, size = 0x4, offset = 0x4, fixed_abs, tag = 'smem constant byte address 0x4 - core index']
  #allocation1 [shape = 'u32[72,128]{1,0:T(1,128)}', space=vmem, size = 0x9000, scoped, tag = 'internal scratch']
  %s0 = inlined_call_operand.vmem [shape: f32[128,128], index: 0, kind: input, shape index: {}]
  %s1 = inlined_call_operand.vmem [shape: f32[128,128], index: 1, kind: input, shape index: {}]
  %s2 = inlined_call_operand.vmem [shape: f32[1,128], index: 2, kind: input, shape index: {}]
  %s3 = inlined_call_operand.vmem [shape: f32[128,128], index: 3, kind: input, shape index: {}]
  %s4 = inlined_call_operand.vmem [shape: f32[1,128], index: 4, kind: input, shape index: {}]
  %s5 = inlined_call_operand.vmem [shape: f32[128,128], index: 5, kind: output, shape index: {}]
  %s6 = sld [smem:[#allocation0]]
  $region30: #{mlp_forward.1} parent=0
    _
  %s8 = ssub.s32 1, %s6
  %s9 = scalar_select 0, %s8, %s6
  // Predicated region
  $region2: #{mlp_forward.1} parent=0 // pred_check
    _
  $region3: #{mlp_forward.1} parent=0 // pred_check_branch
    %11 = sbr.rel (0) target = $region5
  $region4: #{mlp_forward.1} parent=0 // pred_region
    _
  $region5: #{mlp_forward.1} parent=0 // pred_fallthru
    _
  // Predicated region
  $region6: #{mlp_forward.1} parent=0 // pred_check
    _
  $region7: #{mlp_forward.1} parent=0 // pred_check_branch
    %13 = sbr.rel (0) target = $region9
  $region8: #{mlp_forward.1} parent=0 // pred_region
    _
  $region9: #{mlp_forward.1} parent=0 // pred_fallthru
    _
  // Predicated region
  $region10: #{mlp_forward.1} parent=0 // pred_check
    _
  $region11: #{mlp_forward.1} parent=0 // pred_check_branch
    %15 = sbr.rel (0) target = $region13
  $region12: #{mlp_forward.1} parent=0 // pred_region
    _
  $region13: #{mlp_forward.1} parent=0 // pred_fallthru
    _
  // Predicated region
  $region14: #{mlp_forward.1} parent=0 // pred_check
    _
  $region15: #{mlp_forward.1} parent=0 // pred_check_branch
    %17 = sbr.rel (0) target = $region17
  $region16: #{mlp_forward.1} parent=0 // pred_region
    _
  $region17: #{mlp_forward.1} parent=0 // pred_fallthru
    _
  // Predicated region
  $region18: #{mlp_forward.1} parent=0 // pred_check
    _
  $region19: #{mlp_forward.1} parent=0 // pred_check_branch
    %19 = sbr.rel (0) target = $region21
  $region20: #{mlp_forward.1} parent=0 // pred_region
    _
  $region21: #{mlp_forward.1} parent=0 // pred_fallthru
    _
  %v20 = vld [vmem:[%s0] sm:$0xff]
  %v21 = vld [vmem:[%s0 + $0x8] sm:$0xff]
  %v22 = vld [vmem:[%s0 + $0x10] sm:$0xff]
  %v23 = vld [vmem:[%s0 + $0x18] sm:$0xff]
  %v24 = vld [vmem:[%s0 + $0x20] sm:$0xff]
  %v25 = vld [vmem:[%s0 + $0x28] sm:$0xff]
  %v26 = vld [vmem:[%s0 + $0x30] sm:$0xff]
  %v27 = vld [vmem:[%s0 + $0x38] sm:$0xff]
  %v28 = vld [vmem:[%s0 + $0x40] sm:$0xff]
  %v29 = vld [vmem:[%s0 + $0x48] sm:$0xff]
  %v30 = vld [vmem:[%s0 + $0x50] sm:$0xff]
  %v31 = vld [vmem:[%s0 + $0x58] sm:$0xff]
  %v32 = vld [vmem:[%s0 + $0x60] sm:$0xff]
  %v33 = vld [vmem:[%s0 + $0x68] sm:$0xff]
  %v34 = vld [vmem:[%s0 + $0x70] sm:$0xff]
  %v35 = vld [vmem:[%s0 + $0x78] sm:$0xff]
  %v36 = vld [vmem:[%s1] sm:$0xff]
  %v37 = vld [vmem:[%s1 + $0x8] sm:$0xff]
  %v38 = vld [vmem:[%s1 + $0x10] sm:$0xff]
  %v39 = vld [vmem:[%s1 + $0x18] sm:$0xff]
  %v40 = vld [vmem:[%s1 + $0x20] sm:$0xff]
  %v41 = vld [vmem:[%s1 + $0x28] sm:$0xff]
  %v42 = vld [vmem:[%s1 + $0x30] sm:$0xff]
  %v43 = vld [vmem:[%s1 + $0x38] sm:$0xff]
  %v44 = vld [vmem:[%s1 + $0x40] sm:$0xff]
  %v45 = vld [vmem:[%s1 + $0x48] sm:$0xff]
  %v46 = vld [vmem:[%s1 + $0x50] sm:$0xff]
  %v47 = vld [vmem:[%s1 + $0x58] sm:$0xff]
  %v48 = vld [vmem:[%s1 + $0x60] sm:$0xff]
  %v49 = vld [vmem:[%s1 + $0x68] sm:$0xff]
  %v50 = vld [vmem:[%s1 + $0x70] sm:$0xff]
  %v51 = vld [vmem:[%s1 + $0x78] sm:$0xff]
  %v52 = vld [vmem:[%s2] sm:$0x1]
  %v54 = vperm.slane %v52, 0
  %56 = vmatpush.msra.mxu0 %v51
  %57 = vmatpush.msra.mxu0 %v50
  %58 = vmatpush.msra.mxu0 %v49
  %59 = vmatpush.msra.mxu0 %v48
  %60 = vmatpush.msra.mxu0 %v47
  %61 = vmatpush.msra.mxu0 %v46
  %62 = vmatpush.msra.mxu0 %v45
  %63 = vmatpush.msra.mxu0 %v44
  %64 = vmatpush.msra.mxu0 %v43
  %65 = vmatpush.msra.mxu0 %v42
  %66 = vmatpush.msra.mxu0 %v41
  %67 = vmatpush.msra.mxu0 %v40
  %68 = vmatpush.msra.mxu0 %v39
  %69 = vmatpush.msra.mxu0 %v38
  %70 = vmatpush.msra.mxu0 %v37
  %71 = vmatpush.msra.mxu0 %v36
  %72 = vmatmul.f32.gmra.mxu0 %v20
  %v73 = vpop.f32.mrf.mxu0
  %v74 = vadd.f32 %v54, %v73
  %75 = vmatmul.f32.gmra.mxu0 %v21
  %v76 = vpop.f32.mrf.mxu0
  %v77 = vadd.f32 %v54, %v76
  %78 = vmatmul.f32.gmra.mxu0 %v22
  %v79 = vpop.f32.mrf.mxu0
  %v80 = vadd.f32 %v54, %v79
  %81 = vmatmul.f32.gmra.mxu0 %v23
  %v82 = vpop.f32.mrf.mxu0
  %v83 = vadd.f32 %v54, %v82
  %84 = vmatmul.f32.gmra.mxu0 %v24
  %v85 = vpop.f32.mrf.mxu0
  %v86 = vadd.f32 %v54, %v85
  %87 = vmatmul.f32.gmra.mxu0 %v25
  %v88 = vpop.f32.mrf.mxu0
  %v89 = vadd.f32 %v54, %v88
  %90 = vmatmul.f32.gmra.mxu0 %v26
  %v91 = vpop.f32.mrf.mxu0
  %v92 = vadd.f32 %v54, %v91
  %93 = vmatmul.f32.gmra.mxu0 %v27
  %v94 = vpop.f32.mrf.mxu0
  %v95 = vadd.f32 %v54, %v94
  %96 = vmatmul.f32.gmra.mxu0 %v28
  %v97 = vpop.f32.mrf.mxu0
  %v98 = vadd.f32 %v54, %v97
  %99 = vmatmul.f32.gmra.mxu0 %v29
  %v100 = vpop.f32.mrf.mxu0
  %v101 = vadd.f32 %v54, %v100
  %102 = vmatmul.f32.gmra.mxu0 %v30
  %v103 = vpop.f32.mrf.mxu0
  %v104 = vadd.f32 %v54, %v103
  %105 = vmatmul.f32.gmra.mxu0 %v31
  %v106 = vpop.f32.mrf.mxu0
  %v107 = vadd.f32 %v54, %v106
  %108 = vmatmul.f32.gmra.mxu0 %v32
  %v109 = vpop.f32.mrf.mxu0
  %v110 = vadd.f32 %v54, %v109
  %111 = vmatmul.f32.gmra.mxu0 %v33
  %v112 = vpop.f32.mrf.mxu0
  %v113 = vadd.f32 %v54, %v112
  %114 = vmatmul.f32.gmra.mxu0 %v34
  %v115 = vpop.f32.mrf.mxu0
  %v116 = vadd.f32 %v54, %v115
  %117 = vmatmul.f32.gmra.mxu0 %v35
  %v118 = vpop.f32.mrf.mxu0
  %v119 = vadd.f32 %v54, %v118
  %120 = vdwg.mxu0
  %v121 = vmul.f32 %v74, 0.5
  %v122 = vmul.f32 %v77, 0.5
  %v123 = vmul.f32 %v80, 0.5
  %v124 = vmul.f32 %v83, 0.5
  %v125 = vmul.f32 %v86, 0.5
  %v126 = vmul.f32 %v89, 0.5
  %v127 = vmul.f32 %v92, 0.5
  %v128 = vmul.f32 %v95, 0.5
  %v129 = vmul.f32 %v98, 0.5
  %v130 = vmul.f32 %v101, 0.5
  %v131 = vmul.f32 %v104, 0.5
  %v132 = vmul.f32 %v107, 0.5
  %v133 = vmul.f32 %v110, 0.5
  %v134 = vmul.f32 %v113, 0.5
  %v135 = vmul.f32 %v116, 0.5
  %v136 = vmul.f32 %v119, 0.5
  %v137 = vmul.f32 %v74, 0.70710677
  %v138 = vmul.f32 %v77, 0.70710677
  %v139 = vmul.f32 %v80, 0.70710677
  %v140 = vmul.f32 %v83, 0.70710677
  %v141 = vmul.f32 %v86, 0.70710677
  %v142 = vmul.f32 %v89, 0.70710677
  %v143 = vmul.f32 %v92, 0.70710677
  %v144 = vmul.f32 %v95, 0.70710677
  %v145 = vmul.f32 %v98, 0.70710677
  %v146 = vmul.f32 %v101, 0.70710677
  %v147 = vmul.f32 %v104, 0.70710677
  %v148 = vmul.f32 %v107, 0.70710677
  %v149 = vmul.f32 %v110, 0.70710677
  %v150 = vmul.f32 %v113, 0.70710677
  %v151 = vmul.f32 %v116, 0.70710677
  %v152 = vmul.f32 %v119, 0.70710677
  %v153 = vmul.f32 %v137, %v137
  %v154 = vmin.f32 16.0, %v153
  %v155 = vmul.f32 %v154, 2.1237322e-06
  %v156 = vadd.f32 %v155, 0.00028619796
  %v157 = vmul.f32 %v154, %v156
  %v158 = vadd.f32 %v157, 0.0036580483
  %v159 = vmul.f32 %v154, %v158
  %v160 = vadd.f32 %v159, 0.05243302
  %v161 = vmul.f32 %v154, %v160
  %v162 = vadd.f32 %v161, 0.18741608
  %v163 = vmul.f32 %v154, %v162
  %v164 = vadd.f32 %v163, 1.1283791
  %v165 = vmul.f32 %v137, %v164
  %v166 = vmul.f32 %v154, 3.8918573e-05
  %v167 = vadd.f32 %v166, 0.001143296
  %v168 = vmul.f32 %v154, %v167
  %v169 = vadd.f32 %v168, 0.014752088
  %v170 = vmul.f32 %v154, %v169
  %v171 = vadd.f32 %v170, 0.112945676
  %v172 = vmul.f32 %v154, %v171
  %v173 = vadd.f32 %v172, 0.4994258
  %v174 = vmul.f32 %v154, %v173
  %v175 = vadd.f32 %v174, 1.0
  %v176 = vrcp.pop %v175
  %v177 = vmul.f32 %v175, %v176
  %v178 = vsub.f32 1.0, %v177
  %v179 = vmul.f32 %v176, %v178
  %v180 = vadd.f32 %v176, %v179
  %vm181 = vweird.f32 %v175
  %vm182 = vweird.f32 %v176
  %vm183 = vmor %vm181, %vm182
  %v184 = vsel %vm183, %v176, %v180
  %v185 = vand.u32 2147483647, %v175
  %vm186 = vcmp.eq.f32.partialorder %v185, 8.507059e+37
  %v187 = vand.u32 %v175, 2147483648
  %v188 = vor.u32 1.1754944e-38, %v187
  %v189 = vsel %vm186, %v188, %v184
  %v190 = vmul.f32 %v165, %v189
  %v191 = vmin.f32 %v190, 1.0
  %v192 = vmax.f32 %v191, -1.0
  %v193 = vmul.f32 %v138, %v138
  %v194 = vmin.f32 16.0, %v193
  %v195 = vmul.f32 %v194, 2.1237322e-06
  %v196 = vadd.f32 %v195, 0.00028619796
  %v197 = vmul.f32 %v194, %v196
  %v198 = vadd.f32 %v197, 0.0036580483
  %v199 = vmul.f32 %v194, %v198
  %v200 = vadd.f32 %v199, 0.05243302
  %v201 = vmul.f32 %v194, %v200
  %v202 = vadd.f32 %v201, 0.18741608
  %v203 = vmul.f32 %v194, %v202
  %v204 = vadd.f32 %v203, 1.1283791
  %v205 = vmul.f32 %v138, %v204
  %v206 = vmul.f32 %v194, 3.8918573e-05
  %v207 = vadd.f32 %v206, 0.001143296
  %v208 = vmul.f32 %v194, %v207
  %v209 = vadd.f32 %v208, 0.014752088
  %v210 = vmul.f32 %v194, %v209
  %v211 = vadd.f32 %v210, 0.112945676
  %v212 = vmul.f32 %v194, %v211
  %v213 = vadd.f32 %v212, 0.4994258
  %v214 = vmul.f32 %v194, %v213
  %v215 = vadd.f32 %v214, 1.0
  %v216 = vrcp.pop %v215
  %v217 = vmul.f32 %v215, %v216
  %v218 = vsub.f32 1.0, %v217
  %v219 = vmul.f32 %v216, %v218
  %v220 = vadd.f32 %v216, %v219
  %vm221 = vweird.f32 %v215
  %vm222 = vweird.f32 %v216
  %vm223 = vmor %vm221, %vm222
  %v224 = vsel %vm223, %v216, %v220
  %v225 = vand.u32 2147483647, %v215
  %vm226 = vcmp.eq.f32.partialorder %v225, 8.507059e+37
  %v227 = vand.u32 %v215, 2147483648
  %v228 = vor.u32 1.1754944e-38, %v227
  %v229 = vsel %vm226, %v228, %v224
  %v230 = vmul.f32 %v205, %v229
  %v231 = vmin.f32 %v230, 1.0
  %v232 = vmax.f32 %v231, -1.0
  %v233 = vmul.f32 %v139, %v139
  %v234 = vmin.f32 16.0, %v233
  %v235 = vmul.f32 %v234, 2.1237322e-06
  %v236 = vadd.f32 %v235, 0.00028619796
  %v237 = vmul.f32 %v234, %v236
  %v238 = vadd.f32 %v237, 0.0036580483
  %v239 = vmul.f32 %v234, %v238
  %v240 = vadd.f32 %v239, 0.05243302
  %v241 = vmul.f32 %v234, %v240
  %v242 = vadd.f32 %v241, 0.18741608
  %v243 = vmul.f32 %v234, %v242
  %v244 = vadd.f32 %v243, 1.1283791
  %v245 = vmul.f32 %v139, %v244
  %v246 = vmul.f32 %v234, 3.8918573e-05
  %v247 = vadd.f32 %v246, 0.001143296
  %v248 = vmul.f32 %v234, %v247
  %v249 = vadd.f32 %v248, 0.014752088
  %v250 = vmul.f32 %v234, %v249
  %v251 = vadd.f32 %v250, 0.112945676
  %v252 = vmul.f32 %v234, %v251
  %v253 = vadd.f32 %v252, 0.4994258
  %v254 = vmul.f32 %v234, %v253
  %v255 = vadd.f32 %v254, 1.0
  %v256 = vrcp.pop %v255
  %v257 = vmul.f32 %v255, %v256
  %v258 = vsub.f32 1.0, %v257
  %v259 = vmul.f32 %v256, %v258
  %v260 = vadd.f32 %v256, %v259
  %vm261 = vweird.f32 %v255
  %vm262 = vweird.f32 %v256
  %vm263 = vmor %vm261, %vm262
  %v264 = vsel %vm263, %v256, %v260
  %v265 = vand.u32 2147483647, %v255
  %vm266 = vcmp.eq.f32.partialorder %v265, 8.507059e+37
  %v267 = vand.u32 %v255, 2147483648
  %v268 = vor.u32 1.1754944e-38, %v267
  %v269 = vsel %vm266, %v268, %v264
  %v270 = vmul.f32 %v245, %v269
  %v271 = vmin.f32 %v270, 1.0
  %v272 = vmax.f32 %v271, -1.0
  %v273 = vmul.f32 %v140, %v140
  %v274 = vmin.f32 16.0, %v273
  %v275 = vmul.f32 %v274, 2.1237322e-06
  %v276 = vadd.f32 %v275, 0.00028619796
  %v277 = vmul.f32 %v274, %v276
  %v278 = vadd.f32 %v277, 0.0036580483
  %v279 = vmul.f32 %v274, %v278
  %v280 = vadd.f32 %v279, 0.05243302
  %v281 = vmul.f32 %v274, %v280
  %v282 = vadd.f32 %v281, 0.18741608
  %v283 = vmul.f32 %v274, %v282
  %v284 = vadd.f32 %v283, 1.1283791
  %v285 = vmul.f32 %v140, %v284
  %v286 = vmul.f32 %v274, 3.8918573e-05
  %v287 = vadd.f32 %v286, 0.001143296
  %v288 = vmul.f32 %v274, %v287
  %v289 = vadd.f32 %v288, 0.014752088
  %v290 = vmul.f32 %v274, %v289
  %v291 = vadd.f32 %v290, 0.112945676
  %v292 = vmul.f32 %v274, %v291
  %v293 = vadd.f32 %v292, 0.4994258
  %v294 = vmul.f32 %v274, %v293
  %v295 = vadd.f32 %v294, 1.0
  %v296 = vrcp.pop %v295
  %v297 = vmul.f32 %v295, %v296
  %v298 = vsub.f32 1.0, %v297
  %v299 = vmul.f32 %v296, %v298
  %v300 = vadd.f32 %v296, %v299
  %vm301 = vweird.f32 %v295
  %vm302 = vweird.f32 %v296
  %vm303 = vmor %vm301, %vm302
  %v304 = vsel %vm303, %v296, %v300
  %v305 = vand.u32 2147483647, %v295
  %vm306 = vcmp.eq.f32.partialorder %v305, 8.507059e+37
  %v307 = vand.u32 %v295, 2147483648
  %v308 = vor.u32 1.1754944e-38, %v307
  %v309 = vsel %vm306, %v308, %v304
  %v310 = vmul.f32 %v285, %v309
  %v311 = vmin.f32 %v310, 1.0
  %v312 = vmax.f32 %v311, -1.0
  %v313 = vmul.f32 %v141, %v141
  %v314 = vmin.f32 16.0, %v313
  %v315 = vmul.f32 %v314, 2.1237322e-06
  %v316 = vadd.f32 %v315, 0.00028619796
  %v317 = vmul.f32 %v314, %v316
  %v318 = vadd.f32 %v317, 0.0036580483
  %v319 = vmul.f32 %v314, %v318
  %v320 = vadd.f32 %v319, 0.05243302
  %v321 = vmul.f32 %v314, %v320
  %v322 = vadd.f32 %v321, 0.18741608
  %v323 = vmul.f32 %v314, %v322
  %v324 = vadd.f32 %v323, 1.1283791
  %v325 = vmul.f32 %v141, %v324
  %v326 = vmul.f32 %v314, 3.8918573e-05
  %v327 = vadd.f32 %v326, 0.001143296
  %v328 = vmul.f32 %v314, %v327
  %v329 = vadd.f32 %v328, 0.014752088
  %v330 = vmul.f32 %v314, %v329
  %v331 = vadd.f32 %v330, 0.112945676
  %v332 = vmul.f32 %v314, %v331
  %v333 = vadd.f32 %v332, 0.4994258
  %v334 = vmul.f32 %v314, %v333
  %v335 = vadd.f32 %v334, 1.0
  %v336 = vrcp.pop %v335
  %v337 = vmul.f32 %v335, %v336
  %v338 = vsub.f32 1.0, %v337
  %v339 = vmul.f32 %v336, %v338
  %v340 = vadd.f32 %v336, %v339
  %vm341 = vweird.f32 %v335
  %vm342 = vweird.f32 %v336
  %vm343 = vmor %vm341, %vm342
  %v344 = vsel %vm343, %v336, %v340
  %v345 = vand.u32 2147483647, %v335
  %vm346 = vcmp.eq.f32.partialorder %v345, 8.507059e+37
  %v347 = vand.u32 %v335, 2147483648
  %v348 = vor.u32 1.1754944e-38, %v347
  %v349 = vsel %vm346, %v348, %v344
  %v350 = vmul.f32 %v325, %v349
  %v351 = vmin.f32 %v350, 1.0
  %v352 = vmax.f32 %v351, -1.0
  %v353 = vmul.f32 %v142, %v142
  %v354 = vmin.f32 16.0, %v353
  %v355 = vmul.f32 %v354, 2.1237322e-06
  %v356 = vadd.f32 %v355, 0.00028619796
  %v357 = vmul.f32 %v354, %v356
  %v358 = vadd.f32 %v357, 0.0036580483
  %v359 = vmul.f32 %v354, %v358
  %v360 = vadd.f32 %v359, 0.05243302
  %v361 = vmul.f32 %v354, %v360
  %v362 = vadd.f32 %v361, 0.18741608
  %v363 = vmul.f32 %v354, %v362
  %v364 = vadd.f32 %v363, 1.1283791
  %v365 = vmul.f32 %v142, %v364
  %v366 = vmul.f32 %v354, 3.8918573e-05
  %v367 = vadd.f32 %v366, 0.001143296
  %v368 = vmul.f32 %v354, %v367
  %v369 = vadd.f32 %v368, 0.014752088
  %v370 = vmul.f32 %v354, %v369
  %v371 = vadd.f32 %v370, 0.112945676
  %v372 = vmul.f32 %v354, %v371
  %v373 = vadd.f32 %v372, 0.4994258
  %v374 = vmul.f32 %v354, %v373
  %v375 = vadd.f32 %v374, 1.0
  %v376 = vrcp.pop %v375
  %v377 = vmul.f32 %v375, %v376
  %v378 = vsub.f32 1.0, %v377
  %v379 = vmul.f32 %v376, %v378
  %v380 = vadd.f32 %v376, %v379
  %vm381 = vweird.f32 %v375
  %vm382 = vweird.f32 %v376
  %vm383 = vmor %vm381, %vm382
  %v384 = vsel %vm383, %v376, %v380
  %v385 = vand.u32 2147483647, %v375
  %vm386 = vcmp.eq.f32.partialorder %v385, 8.507059e+37
  %v387 = vand.u32 %v375, 2147483648
  %v388 = vor.u32 1.1754944e-38, %v387
  %v389 = vsel %vm386, %v388, %v384
  %v390 = vmul.f32 %v365, %v389
  %v391 = vmin.f32 %v390, 1.0
  %v392 = vmax.f32 %v391, -1.0
  %v393 = vmul.f32 %v143, %v143
  %v394 = vmin.f32 16.0, %v393
  %v395 = vmul.f32 %v394, 2.1237322e-06
  %v396 = vadd.f32 %v395, 0.00028619796
  %v397 = vmul.f32 %v394, %v396
  %v398 = vadd.f32 %v397, 0.0036580483
  %v399 = vmul.f32 %v394, %v398
  %v400 = vadd.f32 %v399, 0.05243302
  %v401 = vmul.f32 %v394, %v400
  %v402 = vadd.f32 %v401, 0.18741608
  %v403 = vmul.f32 %v394, %v402
  %v404 = vadd.f32 %v403, 1.1283791
  %v405 = vmul.f32 %v143, %v404
  %v406 = vmul.f32 %v394, 3.8918573e-05
  %v407 = vadd.f32 %v406, 0.001143296
  %v408 = vmul.f32 %v394, %v407
  %v409 = vadd.f32 %v408, 0.014752088
  %v410 = vmul.f32 %v394, %v409
  %v411 = vadd.f32 %v410, 0.112945676
  %v412 = vmul.f32 %v394, %v411
  %v413 = vadd.f32 %v412, 0.4994258
  %v414 = vmul.f32 %v394, %v413
  %v415 = vadd.f32 %v414, 1.0
  %v416 = vrcp.pop %v415
  %v417 = vmul.f32 %v415, %v416
  %v418 = vsub.f32 1.0, %v417
  %v419 = vmul.f32 %v416, %v418
  %v420 = vadd.f32 %v416, %v419
  %vm421 = vweird.f32 %v415
  %vm422 = vweird.f32 %v416
  %vm423 = vmor %vm421, %vm422
  %v424 = vsel %vm423, %v416, %v420
  %v425 = vand.u32 2147483647, %v415
  %vm426 = vcmp.eq.f32.partialorder %v425, 8.507059e+37
  %v427 = vand.u32 %v415, 2147483648
  %v428 = vor.u32 1.1754944e-38, %v427
  %v429 = vsel %vm426, %v428, %v424
  %v430 = vmul.f32 %v405, %v429
  %v431 = vmin.f32 %v430, 1.0
  %v432 = vmax.f32 %v431, -1.0
  %v433 = vmul.f32 %v144, %v144
  %v434 = vmin.f32 16.0, %v433
  %v435 = vmul.f32 %v434, 2.1237322e-06
  %v436 = vadd.f32 %v435, 0.00028619796
  %v437 = vmul.f32 %v434, %v436
  %v438 = vadd.f32 %v437, 0.0036580483
  %v439 = vmul.f32 %v434, %v438
  %v440 = vadd.f32 %v439, 0.05243302
  %v441 = vmul.f32 %v434, %v440
  %v442 = vadd.f32 %v441, 0.18741608
  %v443 = vmul.f32 %v434, %v442
  %v444 = vadd.f32 %v443, 1.1283791
  %v445 = vmul.f32 %v144, %v444
  %v446 = vmul.f32 %v434, 3.8918573e-05
  %v447 = vadd.f32 %v446, 0.001143296
  %v448 = vmul.f32 %v434, %v447
  %v449 = vadd.f32 %v448, 0.014752088
  %v450 = vmul.f32 %v434, %v449
  %v451 = vadd.f32 %v450, 0.112945676
  %v452 = vmul.f32 %v434, %v451
  %v453 = vadd.f32 %v452, 0.4994258
  %v454 = vmul.f32 %v434, %v453
  %v455 = vadd.f32 %v454, 1.0
  %v456 = vrcp.pop %v455
  %v457 = vmul.f32 %v455, %v456
  %v458 = vsub.f32 1.0, %v457
  %v459 = vmul.f32 %v456, %v458
  %v460 = vadd.f32 %v456, %v459
  %vm461 = vweird.f32 %v455
  %vm462 = vweird.f32 %v456
  %vm463 = vmor %vm461, %vm462
  %v464 = vsel %vm463, %v456, %v460
  %v465 = vand.u32 2147483647, %v455
  %vm466 = vcmp.eq.f32.partialorder %v465, 8.507059e+37
  %v467 = vand.u32 %v455, 2147483648
  %v468 = vor.u32 1.1754944e-38, %v467
  %v469 = vsel %vm466, %v468, %v464
  %v470 = vmul.f32 %v445, %v469
  %v471 = vmin.f32 %v470, 1.0
  %v472 = vmax.f32 %v471, -1.0
  %v473 = vmul.f32 %v145, %v145
  %v474 = vmin.f32 16.0, %v473
  %v475 = vmul.f32 %v474, 2.1237322e-06
  %v476 = vadd.f32 %v475, 0.00028619796
  %v477 = vmul.f32 %v474, %v476
  %v478 = vadd.f32 %v477, 0.0036580483
  %v479 = vmul.f32 %v474, %v478
  %v480 = vadd.f32 %v479, 0.05243302
  %v481 = vmul.f32 %v474, %v480
  %v482 = vadd.f32 %v481, 0.18741608
  %v483 = vmul.f32 %v474, %v482
  %v484 = vadd.f32 %v483, 1.1283791
  %v485 = vmul.f32 %v145, %v484
  %v486 = vmul.f32 %v474, 3.8918573e-05
  %v487 = vadd.f32 %v486, 0.001143296
  %v488 = vmul.f32 %v474, %v487
  %v489 = vadd.f32 %v488, 0.014752088
  %v490 = vmul.f32 %v474, %v489
  %v491 = vadd.f32 %v490, 0.112945676
  %v492 = vmul.f32 %v474, %v491
  %v493 = vadd.f32 %v492, 0.4994258
  %v494 = vmul.f32 %v474, %v493
  %v495 = vadd.f32 %v494, 1.0
  %v496 = vrcp.pop %v495
  %v497 = vmul.f32 %v495, %v496
  %v498 = vsub.f32 1.0, %v497
  %v499 = vmul.f32 %v496, %v498
  %v500 = vadd.f32 %v496, %v499
  %vm501 = vweird.f32 %v495
  %vm502 = vweird.f32 %v496
  %vm503 = vmor %vm501, %vm502
  %v504 = vsel %vm503, %v496, %v500
  %v505 = vand.u32 2147483647, %v495
  %vm506 = vcmp.eq.f32.partialorder %v505, 8.507059e+37
  %v507 = vand.u32 %v495, 2147483648
  %v508 = vor.u32 1.1754944e-38, %v507
  %v509 = vsel %vm506, %v508, %v504
  %v510 = vmul.f32 %v485, %v509
  %v511 = vmin.f32 %v510, 1.0
  %v512 = vmax.f32 %v511, -1.0
  %v513 = vmul.f32 %v146, %v146
  %v514 = vmin.f32 16.0, %v513
  %v515 = vmul.f32 %v514, 2.1237322e-06
  %v516 = vadd.f32 %v515, 0.00028619796
  %v517 = vmul.f32 %v514, %v516
  %v518 = vadd.f32 %v517, 0.0036580483
  %v519 = vmul.f32 %v514, %v518
  %v520 = vadd.f32 %v519, 0.05243302
  %v521 = vmul.f32 %v514, %v520
  %v522 = vadd.f32 %v521, 0.18741608
  %v523 = vmul.f32 %v514, %v522
  %v524 = vadd.f32 %v523, 1.1283791
  %v525 = vmul.f32 %v146, %v524
  %v526 = vmul.f32 %v514, 3.8918573e-05
  %v527 = vadd.f32 %v526, 0.001143296
  %v528 = vmul.f32 %v514, %v527
  %v529 = vadd.f32 %v528, 0.014752088
  %v530 = vmul.f32 %v514, %v529
  %v531 = vadd.f32 %v530, 0.112945676
  %v532 = vmul.f32 %v514, %v531
  %v533 = vadd.f32 %v532, 0.4994258
  %v534 = vmul.f32 %v514, %v533
  %v535 = vadd.f32 %v534, 1.0
  %v536 = vrcp.pop %v535
  %v537 = vmul.f32 %v535, %v536
  %v538 = vsub.f32 1.0, %v537
  %v539 = vmul.f32 %v536, %v538
  %v540 = vadd.f32 %v536, %v539
  %vm541 = vweird.f32 %v535
  %vm542 = vweird.f32 %v536
  %vm543 = vmor %vm541, %vm542
  %v544 = vsel %vm543, %v536, %v540
  %v545 = vand.u32 2147483647, %v535
  %vm546 = vcmp.eq.f32.partialorder %v545, 8.507059e+37
  %v547 = vand.u32 %v535, 2147483648
  %v548 = vor.u32 1.1754944e-38, %v547
  %v549 = vsel %vm546, %v548, %v544
  %v550 = vmul.f32 %v525, %v549
  %v551 = vmin.f32 %v550, 1.0
  %v552 = vmax.f32 %v551, -1.0
  %v553 = vmul.f32 %v147, %v147
  %v554 = vmin.f32 16.0, %v553
  %v555 = vmul.f32 %v554, 2.1237322e-06
  %v556 = vadd.f32 %v555, 0.00028619796
  %v557 = vmul.f32 %v554, %v556
  %v558 = vadd.f32 %v557, 0.0036580483
  %v559 = vmul.f32 %v554, %v558
  %v560 = vadd.f32 %v559, 0.05243302
  %v561 = vmul.f32 %v554, %v560
  %v562 = vadd.f32 %v561, 0.18741608
  %v563 = vmul.f32 %v554, %v562
  %v564 = vadd.f32 %v563, 1.1283791
  %v565 = vmul.f32 %v147, %v564
  %v566 = vmul.f32 %v554, 3.8918573e-05
  %v567 = vadd.f32 %v566, 0.001143296
  %v568 = vmul.f32 %v554, %v567
  %v569 = vadd.f32 %v568, 0.014752088
  %v570 = vmul.f32 %v554, %v569
  %v571 = vadd.f32 %v570, 0.112945676
  %v572 = vmul.f32 %v554, %v571
  %v573 = vadd.f32 %v572, 0.4994258
  %v574 = vmul.f32 %v554, %v573
  %v575 = vadd.f32 %v574, 1.0
  %v576 = vrcp.pop %v575
  %v577 = vmul.f32 %v575, %v576
  %v578 = vsub.f32 1.0, %v577
  %v579 = vmul.f32 %v576, %v578
  %v580 = vadd.f32 %v576, %v579
  %vm581 = vweird.f32 %v575
  %vm582 = vweird.f32 %v576
  %vm583 = vmor %vm581, %vm582
  %v584 = vsel %vm583, %v576, %v580
  %v585 = vand.u32 2147483647, %v575
  %vm586 = vcmp.eq.f32.partialorder %v585, 8.507059e+37
  %v587 = vand.u32 %v575, 2147483648
  %v588 = vor.u32 1.1754944e-38, %v587
  %v589 = vsel %vm586, %v588, %v584
  %v590 = vmul.f32 %v565, %v589
  %v591 = vmin.f32 %v590, 1.0
  %v592 = vmax.f32 %v591, -1.0
  %v593 = vmul.f32 %v148, %v148
  %v594 = vmin.f32 16.0, %v593
  %v595 = vmul.f32 %v594, 2.1237322e-06
  %v596 = vadd.f32 %v595, 0.00028619796
  %v597 = vmul.f32 %v594, %v596
  %v598 = vadd.f32 %v597, 0.0036580483
  %v599 = vmul.f32 %v594, %v598
  %v600 = vadd.f32 %v599, 0.05243302
  %v601 = vmul.f32 %v594, %v600
  %v602 = vadd.f32 %v601, 0.18741608
  %v603 = vmul.f32 %v594, %v602
  %v604 = vadd.f32 %v603, 1.1283791
  %v605 = vmul.f32 %v148, %v604
  %v606 = vmul.f32 %v594, 3.8918573e-05
  %v607 = vadd.f32 %v606, 0.001143296
  %v608 = vmul.f32 %v594, %v607
  %v609 = vadd.f32 %v608, 0.014752088
  %v610 = vmul.f32 %v594, %v609
  %v611 = vadd.f32 %v610, 0.112945676
  %v612 = vmul.f32 %v594, %v611
  %v613 = vadd.f32 %v612, 0.4994258
  %v614 = vmul.f32 %v594, %v613
  %v615 = vadd.f32 %v614, 1.0
  %v616 = vrcp.pop %v615
  %v617 = vmul.f32 %v615, %v616
  %v618 = vsub.f32 1.0, %v617
  %v619 = vmul.f32 %v616, %v618
  %v620 = vadd.f32 %v616, %v619
  %vm621 = vweird.f32 %v615
  %vm622 = vweird.f32 %v616
  %vm623 = vmor %vm621, %vm622
  %v624 = vsel %vm623, %v616, %v620
  %v625 = vand.u32 2147483647, %v615
  %vm626 = vcmp.eq.f32.partialorder %v625, 8.507059e+37
  %v627 = vand.u32 %v615, 2147483648
  %v628 = vor.u32 1.1754944e-38, %v627
  %v629 = vsel %vm626, %v628, %v624
  %v630 = vmul.f32 %v605, %v629
  %v631 = vmin.f32 %v630, 1.0
  %v632 = vmax.f32 %v631, -1.0
  %v633 = vmul.f32 %v149, %v149
  %v634 = vmin.f32 16.0, %v633
  %v635 = vmul.f32 %v634, 2.1237322e-06
  %v636 = vadd.f32 %v635, 0.00028619796
  %v637 = vmul.f32 %v634, %v636
  %v638 = vadd.f32 %v637, 0.0036580483
  %v639 = vmul.f32 %v634, %v638
  %v640 = vadd.f32 %v639, 0.05243302
  %v641 = vmul.f32 %v634, %v640
  %v642 = vadd.f32 %v641, 0.18741608
  %v643 = vmul.f32 %v634, %v642
  %v644 = vadd.f32 %v643, 1.1283791
  %v645 = vmul.f32 %v149, %v644
  %v646 = vmul.f32 %v634, 3.8918573e-05
  %v647 = vadd.f32 %v646, 0.001143296
  %v648 = vmul.f32 %v634, %v647
  %v649 = vadd.f32 %v648, 0.014752088
  %v650 = vmul.f32 %v634, %v649
  %v651 = vadd.f32 %v650, 0.112945676
  %v652 = vmul.f32 %v634, %v651
  %v653 = vadd.f32 %v652, 0.4994258
  %v654 = vmul.f32 %v634, %v653
  %v655 = vadd.f32 %v654, 1.0
  %v656 = vrcp.pop %v655
  %v657 = vmul.f32 %v655, %v656
  %v658 = vsub.f32 1.0, %v657
  %v659 = vmul.f32 %v656, %v658
  %v660 = vadd.f32 %v656, %v659
  %vm661 = vweird.f32 %v655
  %vm662 = vweird.f32 %v656
  %vm663 = vmor %vm661, %vm662
  %v664 = vsel %vm663, %v656, %v660
  %v665 = vand.u32 2147483647, %v655
  %vm666 = vcmp.eq.f32.partialorder %v665, 8.507059e+37
  %v667 = vand.u32 %v655, 2147483648
  %v668 = vor.u32 1.1754944e-38, %v667
  %v669 = vsel %vm666, %v668, %v664
  %v670 = vmul.f32 %v645, %v669
  %v671 = vmin.f32 %v670, 1.0
  %v672 = vmax.f32 %v671, -1.0
  %v673 = vmul.f32 %v150, %v150
  %v674 = vmin.f32 16.0, %v673
  %v675 = vmul.f32 %v674, 2.1237322e-06
  %v676 = vadd.f32 %v675, 0.00028619796
  %v677 = vmul.f32 %v674, %v676
  %v678 = vadd.f32 %v677, 0.0036580483
  %v679 = vmul.f32 %v674, %v678
  %v680 = vadd.f32 %v679, 0.05243302
  %v681 = vmul.f32 %v674, %v680
  %v682 = vadd.f32 %v681, 0.18741608
  %v683 = vmul.f32 %v674, %v682
  %v684 = vadd.f32 %v683, 1.1283791
  %v685 = vmul.f32 %v150, %v684
  %v686 = vmul.f32 %v674, 3.8918573e-05
  %v687 = vadd.f32 %v686, 0.001143296
  %v688 = vmul.f32 %v674, %v687
  %v689 = vadd.f32 %v688, 0.014752088
  %v690 = vmul.f32 %v674, %v689
  %v691 = vadd.f32 %v690, 0.112945676
  %v692 = vmul.f32 %v674, %v691
  %v693 = vadd.f32 %v692, 0.4994258
  %v694 = vmul.f32 %v674, %v693
  %v695 = vadd.f32 %v694, 1.0
  %v696 = vrcp.pop %v695
  %v697 = vmul.f32 %v695, %v696
  %v698 = vsub.f32 1.0, %v697
  %v699 = vmul.f32 %v696, %v698
  %v700 = vadd.f32 %v696, %v699
  %vm701 = vweird.f32 %v695
  %vm702 = vweird.f32 %v696
  %vm703 = vmor %vm701, %vm702
  %v704 = vsel %vm703, %v696, %v700
  %v705 = vand.u32 2147483647, %v695
  %vm706 = vcmp.eq.f32.partialorder %v705, 8.507059e+37
  %v707 = vand.u32 %v695, 2147483648
  %v708 = vor.u32 1.1754944e-38, %v707
  %v709 = vsel %vm706, %v708, %v704
  %v710 = vmul.f32 %v685, %v709
  %v711 = vmin.f32 %v710, 1.0
  %v712 = vmax.f32 %v711, -1.0
  %v713 = vmul.f32 %v151, %v151
  %v714 = vmin.f32 16.0, %v713
  %v715 = vmul.f32 %v714, 2.1237322e-06
  %v716 = vadd.f32 %v715, 0.00028619796
  %v717 = vmul.f32 %v714, %v716
  %v718 = vadd.f32 %v717, 0.0036580483
  %v719 = vmul.f32 %v714, %v718
  %v720 = vadd.f32 %v719, 0.05243302
  %v721 = vmul.f32 %v714, %v720
  %v722 = vadd.f32 %v721, 0.18741608
  %v723 = vmul.f32 %v714, %v722
  %v724 = vadd.f32 %v723, 1.1283791
  %v725 = vmul.f32 %v151, %v724
  %v726 = vmul.f32 %v714, 3.8918573e-05
  %v727 = vadd.f32 %v726, 0.001143296
  %v728 = vmul.f32 %v714, %v727
  %v729 = vadd.f32 %v728, 0.014752088
  %v730 = vmul.f32 %v714, %v729
  %v731 = vadd.f32 %v730, 0.112945676
  %v732 = vmul.f32 %v714, %v731
  %v733 = vadd.f32 %v732, 0.4994258
  %v734 = vmul.f32 %v714, %v733
  %v735 = vadd.f32 %v734, 1.0
  %v736 = vrcp.pop %v735
  %v737 = vmul.f32 %v735, %v736
  %v738 = vsub.f32 1.0, %v737
  %v739 = vmul.f32 %v736, %v738
  %v740 = vadd.f32 %v736, %v739
  %vm741 = vweird.f32 %v735
  %vm742 = vweird.f32 %v736
  %vm743 = vmor %vm741, %vm742
  %v744 = vsel %vm743, %v736, %v740
  %v745 = vand.u32 2147483647, %v735
  %vm746 = vcmp.eq.f32.partialorder %v745, 8.507059e+37
  %v747 = vand.u32 %v735, 2147483648
  %v748 = vor.u32 1.1754944e-38, %v747
  %v749 = vsel %vm746, %v748, %v744
  %v750 = vmul.f32 %v725, %v749
  %v751 = vmin.f32 %v750, 1.0
  %v752 = vmax.f32 %v751, -1.0
  %v753 = vmul.f32 %v152, %v152
  %v754 = vmin.f32 16.0, %v753
  %v755 = vmul.f32 %v754, 2.1237322e-06
  %v756 = vadd.f32 %v755, 0.00028619796
  %v757 = vmul.f32 %v754, %v756
  %v758 = vadd.f32 %v757, 0.0036580483
  %v759 = vmul.f32 %v754, %v758
  %v760 = vadd.f32 %v759, 0.05243302
  %v761 = vmul.f32 %v754, %v760
  %v762 = vadd.f32 %v761, 0.18741608
  %v763 = vmul.f32 %v754, %v762
  %v764 = vadd.f32 %v763, 1.1283791
  %v765 = vmul.f32 %v152, %v764
  %v766 = vmul.f32 %v754, 3.8918573e-05
  %v767 = vadd.f32 %v766, 0.001143296
  %v768 = vmul.f32 %v754, %v767
  %v769 = vadd.f32 %v768, 0.014752088
  %v770 = vmul.f32 %v754, %v769
  %v771 = vadd.f32 %v770, 0.112945676
  %v772 = vmul.f32 %v754, %v771
  %v773 = vadd.f32 %v772, 0.4994258
  %v774 = vmul.f32 %v754, %v773
  %v775 = vadd.f32 %v774, 1.0
  %v776 = vrcp.pop %v775
  %v777 = vmul.f32 %v775, %v776
  %v778 = vsub.f32 1.0, %v777
  %v779 = vmul.f32 %v776, %v778
  %v780 = vadd.f32 %v776, %v779
  %vm781 = vweird.f32 %v775
  %vm782 = vweird.f32 %v776
  %vm783 = vmor %vm781, %vm782
  %v784 = vsel %vm783, %v776, %v780
  %v785 = vand.u32 2147483647, %v775
  %vm786 = vcmp.eq.f32.partialorder %v785, 8.507059e+37
  %v787 = vand.u32 %v775, 2147483648
  %v788 = vor.u32 1.1754944e-38, %v787
  %v789 = vsel %vm786, %v788, %v784
  %v790 = vmul.f32 %v765, %v789
  %v791 = vmin.f32 %v790, 1.0
  %v792 = vmax.f32 %v791, -1.0
  %v793 = vadd.f32 %v192, 1.0
  %v794 = vadd.f32 %v232, 1.0
  %v795 = vadd.f32 %v272, 1.0
  %v796 = vadd.f32 %v312, 1.0
  %v797 = vadd.f32 %v352, 1.0
  %v798 = vadd.f32 %v392, 1.0
  %v799 = vadd.f32 %v432, 1.0
  %v800 = vadd.f32 %v472, 1.0
  %v801 = vadd.f32 %v512, 1.0
  %v802 = vadd.f32 %v552, 1.0
  %v803 = vadd.f32 %v592, 1.0
  %v804 = vadd.f32 %v632, 1.0
  %v805 = vadd.f32 %v672, 1.0
  %v806 = vadd.f32 %v712, 1.0
  %v807 = vadd.f32 %v752, 1.0
  %v808 = vadd.f32 %v792, 1.0
  %v809 = vmul.f32 %v121, %v793
  %v810 = vmul.f32 %v122, %v794
  %v811 = vmul.f32 %v123, %v795
  %v812 = vmul.f32 %v124, %v796
  %v813 = vmul.f32 %v125, %v797
  %v814 = vmul.f32 %v126, %v798
  %v815 = vmul.f32 %v127, %v799
  %v816 = vmul.f32 %v128, %v800
  %v817 = vmul.f32 %v129, %v801
  %v818 = vmul.f32 %v130, %v802
  %v819 = vmul.f32 %v131, %v803
  %v820 = vmul.f32 %v132, %v804
  %v821 = vmul.f32 %v133, %v805
  %v822 = vmul.f32 %v134, %v806
  %v823 = vmul.f32 %v135, %v807
  %v824 = vmul.f32 %v136, %v808
  %v825 = vld [vmem:[%s3] sm:$0xff]
  %v826 = vld [vmem:[%s3 + $0x8] sm:$0xff]
  %v827 = vld [vmem:[%s3 + $0x10] sm:$0xff]
  %v828 = vld [vmem:[%s3 + $0x18] sm:$0xff]
  %v829 = vld [vmem:[%s3 + $0x20] sm:$0xff]
  %v830 = vld [vmem:[%s3 + $0x28] sm:$0xff]
  %v831 = vld [vmem:[%s3 + $0x30] sm:$0xff]
  %v832 = vld [vmem:[%s3 + $0x38] sm:$0xff]
  %v833 = vld [vmem:[%s3 + $0x40] sm:$0xff]
  %v834 = vld [vmem:[%s3 + $0x48] sm:$0xff]
  %v835 = vld [vmem:[%s3 + $0x50] sm:$0xff]
  %v836 = vld [vmem:[%s3 + $0x58] sm:$0xff]
  %v837 = vld [vmem:[%s3 + $0x60] sm:$0xff]
  %v838 = vld [vmem:[%s3 + $0x68] sm:$0xff]
  %v839 = vld [vmem:[%s3 + $0x70] sm:$0xff]
  %v840 = vld [vmem:[%s3 + $0x78] sm:$0xff]
  %v841 = vld [vmem:[%s4] sm:$0x1]
  %v843 = vperm.slane %v841, 0
  %845 = vmatpush.msra.mxu0 %v840
  %846 = vmatpush.msra.mxu0 %v839
  %847 = vmatpush.msra.mxu0 %v838
  %848 = vmatpush.msra.mxu0 %v837
  %849 = vmatpush.msra.mxu0 %v836
  %850 = vmatpush.msra.mxu0 %v835
  %851 = vmatpush.msra.mxu0 %v834
  %852 = vmatpush.msra.mxu0 %v833
  %853 = vmatpush.msra.mxu0 %v832
  %854 = vmatpush.msra.mxu0 %v831
  %855 = vmatpush.msra.mxu0 %v830
  %856 = vmatpush.msra.mxu0 %v829
  %857 = vmatpush.msra.mxu0 %v828
  %858 = vmatpush.msra.mxu0 %v827
  %859 = vmatpush.msra.mxu0 %v826
  %860 = vmatpush.msra.mxu0 %v825
  %861 = vmatmul.f32.gmra.mxu0 %v809
  %v862 = vpop.f32.mrf.mxu0
  %v863 = vadd.f32 %v843, %v862
  %864 = vmatmul.f32.gmra.mxu0 %v810
  %v865 = vpop.f32.mrf.mxu0
  %v866 = vadd.f32 %v843, %v865
  %867 = vmatmul.f32.gmra.mxu0 %v811
  %v868 = vpop.f32.mrf.mxu0
  %v869 = vadd.f32 %v843, %v868
  %870 = vmatmul.f32.gmra.mxu0 %v812
  %v871 = vpop.f32.mrf.mxu0
  %v872 = vadd.f32 %v843, %v871
  %873 = vmatmul.f32.gmra.mxu0 %v813
  %v874 = vpop.f32.mrf.mxu0
  %v875 = vadd.f32 %v843, %v874
  %876 = vmatmul.f32.gmra.mxu0 %v814
  %v877 = vpop.f32.mrf.mxu0
  %v878 = vadd.f32 %v843, %v877
  %879 = vmatmul.f32.gmra.mxu0 %v815
  %v880 = vpop.f32.mrf.mxu0
  %v881 = vadd.f32 %v843, %v880
  %882 = vmatmul.f32.gmra.mxu0 %v816
  %v883 = vpop.f32.mrf.mxu0
  %v884 = vadd.f32 %v843, %v883
  %885 = vmatmul.f32.gmra.mxu0 %v817
  %v886 = vpop.f32.mrf.mxu0
  %v887 = vadd.f32 %v843, %v886
  %888 = vmatmul.f32.gmra.mxu0 %v818
  %v889 = vpop.f32.mrf.mxu0
  %v890 = vadd.f32 %v843, %v889
  %891 = vmatmul.f32.gmra.mxu0 %v819
  %v892 = vpop.f32.mrf.mxu0
  %v893 = vadd.f32 %v843, %v892
  %894 = vmatmul.f32.gmra.mxu0 %v820
  %v895 = vpop.f32.mrf.mxu0
  %v896 = vadd.f32 %v843, %v895
  %897 = vmatmul.f32.gmra.mxu0 %v821
  %v898 = vpop.f32.mrf.mxu0
  %v899 = vadd.f32 %v843, %v898
  %900 = vmatmul.f32.gmra.mxu0 %v822
  %v901 = vpop.f32.mrf.mxu0
  %v902 = vadd.f32 %v843, %v901
  %903 = vmatmul.f32.gmra.mxu0 %v823
  %v904 = vpop.f32.mrf.mxu0
  %v905 = vadd.f32 %v843, %v904
  %906 = vmatmul.f32.gmra.mxu0 %v824
  %v907 = vpop.f32.mrf.mxu0
  %v908 = vadd.f32 %v843, %v907
  %909 = vdwg.mxu0
  %910 = vst [vmem:[%s5] sm:$0xff] %v863
  %911 = vst [vmem:[%s5 + $0x8] sm:$0xff] %v866
  %912 = vst [vmem:[%s5 + $0x10] sm:$0xff] %v869
  %913 = vst [vmem:[%s5 + $0x18] sm:$0xff] %v872
  %914 = vst [vmem:[%s5 + $0x20] sm:$0xff] %v875
  %915 = vst [vmem:[%s5 + $0x28] sm:$0xff] %v878
  %916 = vst [vmem:[%s5 + $0x30] sm:$0xff] %v881
  %917 = vst [vmem:[%s5 + $0x38] sm:$0xff] %v884
  %918 = vst [vmem:[%s5 + $0x40] sm:$0xff] %v887
  %919 = vst [vmem:[%s5 + $0x48] sm:$0xff] %v890
  %920 = vst [vmem:[%s5 + $0x50] sm:$0xff] %v893
  %921 = vst [vmem:[%s5 + $0x58] sm:$0xff] %v896
  %922 = vst [vmem:[%s5 + $0x60] sm:$0xff] %v899
  %923 = vst [vmem:[%s5 + $0x68] sm:$0xff] %v902
  %924 = vst [vmem:[%s5 + $0x70] sm:$0xff] %v905
  %925 = vst [vmem:[%s5 + $0x78] sm:$0xff] %v908
  // Predicated region
  $region22: #{mlp_forward.1} parent=0 // pred_check
    _
  $region23: #{mlp_forward.1} parent=0 // pred_check_branch
    %927 = sbr.rel (0) target = $region25
  $region24: #{mlp_forward.1} parent=0 // pred_region
    _
  $region25: #{mlp_forward.1} parent=0 // pred_fallthru
    _
  // Predicated region
  $region26: #{mlp_forward.1} parent=0 // pred_check
    _
  $region27: #{mlp_forward.1} parent=0 // pred_check_branch
    %929 = sbr.rel (0) target = $region29
  $region28: #{mlp_forward.1} parent=0 // pred_region
    _
  $region29: #{mlp_forward.1} parent=0 // pred_fallthru
    _

</llo_original>
